<compile_context>
chip_gen: v5e
topology: v5e:2x2
jax: 0.10.0
libtpu: 0.0.40
codegen_flags: <defaults>
</compile_context>

<pallas_src>
import functools

import jax
import jax.numpy as jnp
from jax.experimental import pallas as pl
from jax.experimental.pallas import tpu as pltpu

LANES = 128     # lane width (fast axis)
SUBLANES = 8    # sublane tile


def _mag_minmax_norm_kernel(re_ref, im_ref, ore_ref, oim_ref, *, n_valid, n_total):
    """Fused: global min/max of |z| (via mag^2) + elementwise normalization."""
    re = re_ref[...]
    im = im_ref[...]
    mag2 = re * re + im * im          # VPU only; sqrt deferred to 2 scalars

    if n_valid != n_total:
        # Mask the zero-padded tail (static python branch; skipped when no pad).
        rows, lanes = re.shape
        row_idx = jax.lax.broadcasted_iota(jnp.int32, (rows, lanes), 0)
        lane_idx = jax.lax.broadcasted_iota(jnp.int32, (rows, lanes), 1)
        valid = (row_idx * lanes + lane_idx) < n_valid
        min_src = jnp.where(valid, mag2, jnp.inf)
        max_src = jnp.where(valid, mag2, -jnp.inf)
    else:
        min_src = mag2
        max_src = mag2

    # sqrt is monotone -> min/max commute with it; only two scalar sqrts.
    x_min = jnp.sqrt(jnp.min(min_src))
    x_max = jnp.sqrt(jnp.max(max_src))
    # Exact scalar divide (NOT approx reciprocal: keeps 1e-5 tolerance safe).
    # Note: if all magnitudes are equal, denom == 0 -> NaN/Inf, same as torch.
    scale = 1.0 / (x_max - x_min)

    ore_ref[...] = (re - x_min) * scale   # shift applies to the real part only
    oim_ref[...] = im * scale


@jax.jit
def mag_min_max_norm(z: jax.Array) -> jax.Array:
    """Pallas implementation of complextorch MagMinMaxNorm.forward (complex in)."""
    orig_shape = z.shape
    n = z.size

    re = jnp.real(z).reshape(-1)
    im = jnp.imag(z).reshape(-1)

    # Constant (zero) pad only if needed; padded tail is masked in-kernel.
    block = SUBLANES * LANES
    n_pad = (-n) % block
    if n_pad:
        re = jnp.pad(re, (0, n_pad))
        im = jnp.pad(im, (0, n_pad))

    total = n + n_pad
    rows = total // LANES
    re2 = re.reshape(rows, LANES)
    im2 = im.reshape(rows, LANES)

    # Whole problem is VMEM-resident: 4 planes x rows x 128 x 4B (test: 32 KiB).
    # TODO(synk): for inputs larger than a few MiB per plane, switch to a
    # gridded two-pass variant with a vector-resident running min/max.
    kernel = functools.partial(_mag_minmax_norm_kernel, n_valid=n, n_total=total)
    vmem = pl.BlockSpec(memory_space=pltpu.MemorySpace.VMEM)

    ore, oim = pl.pallas_call(
        kernel,
        out_shape=(
            jax.ShapeDtypeStruct((rows, LANES), jnp.float32),
            jax.ShapeDtypeStruct((rows, LANES), jnp.float32),
        ),
        in_specs=[vmem, vmem],
        out_specs=(vmem, vmem),
    )(re2, im2)

    out = jax.lax.complex(ore, oim).reshape(-1)
    if n_pad:
        out = out[:n]
    return out.reshape(orig_shape)


if __name__ == "__main__":
    key = jax.random.PRNGKey(0)
    k_re, k_im = jax.random.split(key)
    shape = (2, 4, 16, 16)  # NCHW, complex64
    z = (jax.random.normal(k_re, shape, dtype=jnp.float32)
         + 1j * jax.random.normal(k_im, shape, dtype=jnp.float32)
         ).astype(jnp.complex64)

    out = jax.block_until_ready(mag_min_max_norm(z))

    # Pure-JAX reference of the exact torch semantics.
    mag = jnp.abs(z)
    mn = jnp.min(mag)
    mx = jnp.max(mag)
    ref = (z - mn) / (mx - mn)

    assert out.shape == z.shape and out.dtype == jnp.complex64
    assert jnp.allclose(out, ref, rtol=1e-5, atol=1e-5)
    print("KERNEL_OK")
</pallas_src>

<mosaic_0001>
module attributes {stable_mosaic.version = 11 : i64} {
  func.func @_mag_minmax_norm_kernel(%arg0: memref<16x128xf32, #tpu.memory_space<vmem>>, %arg1: memref<16x128xf32, #tpu.memory_space<vmem>>, %arg2: memref<16x128xf32, #tpu.memory_space<vmem>>, %arg3: memref<16x128xf32, #tpu.memory_space<vmem>>) attributes {dimension_semantics = [], scalar_prefetch = 0 : i64, scratch_operands = 0 : i64, tpu.core_type = #tpu.core_type<tc>} {
    %c0 = arith.constant 0 : index
    %c0_0 = arith.constant 0 : index
    %0 = vector.load %arg0[%c0, %c0_0] : memref<16x128xf32, #tpu.memory_space<vmem>>, vector<16x128xf32>
    %c0_1 = arith.constant 0 : index
    %c0_2 = arith.constant 0 : index
    %1 = vector.load %arg1[%c0_1, %c0_2] : memref<16x128xf32, #tpu.memory_space<vmem>>, vector<16x128xf32>
    %2 = arith.mulf %0, %0 : vector<16x128xf32>
    %3 = arith.mulf %1, %1 : vector<16x128xf32>
    %4 = arith.addf %2, %3 : vector<16x128xf32>
    %5 = vector.shape_cast %4 : vector<16x128xf32> to vector<1x16x128xf32>
    %cst = arith.constant dense<0x7F800000> : vector<1xf32>
    %6 = vector.multi_reduction <minimumf>, %5, %cst [1, 2] : vector<1x16x128xf32> to vector<1xf32>
    %7 = vector.shape_cast %6 : vector<1xf32> to vector<1x1x1xf32>
    %8 = vector.extract %7[0, 0, 0] : f32 from vector<1x1x1xf32>
    %9 = math.sqrt %8 : f32
    %10 = vector.shape_cast %4 : vector<16x128xf32> to vector<1x16x128xf32>
    %cst_3 = arith.constant dense<0xFF800000> : vector<1xf32>
    %11 = vector.multi_reduction <maximumf>, %10, %cst_3 [1, 2] : vector<1x16x128xf32> to vector<1xf32>
    %12 = vector.shape_cast %11 : vector<1xf32> to vector<1x1x1xf32>
    %13 = vector.extract %12[0, 0, 0] : f32 from vector<1x1x1xf32>
    %14 = math.sqrt %13 : f32
    %15 = arith.subf %14, %9 : f32
    %cst_4 = arith.constant 1.000000e+00 : f32
    %16 = arith.divf %cst_4, %15 : f32
    %17 = vector.broadcast %9 : f32 to vector<16x128xf32>
    %18 = arith.subf %0, %17 : vector<16x128xf32>
    %19 = vector.broadcast %16 : f32 to vector<16x128xf32>
    %20 = arith.mulf %18, %19 : vector<16x128xf32>
    %c0_5 = arith.constant 0 : index
    %c0_6 = arith.constant 0 : index
    %21 = vector.load %arg2[%c0_5, %c0_6] : memref<16x128xf32, #tpu.memory_space<vmem>>, vector<16x128xf32>
    tpu.vector_store %arg2[%c0_5, %c0_6], %20 {strides = array<i32>} : memref<16x128xf32, #tpu.memory_space<vmem>>, vector<16x128xf32>,
    %22 = vector.broadcast %16 : f32 to vector<16x128xf32>
    %23 = arith.mulf %1, %22 : vector<16x128xf32>
    %c0_7 = arith.constant 0 : index
    %c0_8 = arith.constant 0 : index
    %24 = vector.load %arg3[%c0_7, %c0_8] : memref<16x128xf32, #tpu.memory_space<vmem>>, vector<16x128xf32>
    tpu.vector_store %arg3[%c0_7, %c0_8], %23 {strides = array<i32>} : memref<16x128xf32, #tpu.memory_space<vmem>>, vector<16x128xf32>,
    return
  }
}

</mosaic_0001>

<llo_original>
// kernel: custom-call.1
$region0: #{custom-call.1}
  %s0 = inlined_call_operand.hbm [shape: c64[2,4,16,16], index: 0, kind: input, shape index: {}]
  %s1 = inlined_call_operand.vmem [shape: f32[2,4,16,16], index: 1, kind: output, shape index: {}]
  %s2 = scalar_lea.hbm %s0, 128
  $region1: #{custom-call.1} parent=0
    #allocation0 [shape = 's32[1]{0}', space=sflag, size = 0x4, scoped, tag = 'scoped memory for custom-call.1']
    %3 = vsyncpa [#allocation0], 0
    %s5 = sshll.u32 %s2, 4
    %s6 = int_to_ptr.hbm [resolvable:$true] %s5
    %s7 = sshll.u32 %s1, 4
    %s8 = int_to_ptr.vmem [resolvable:$true] %s7
    %10 = dma.hbm_to_vmem [thread:$0]  %s6, 2048, %s8, [#allocation0]
    %12 = dma.done [#allocation0], 2048
    %13 = vsyncpa [#allocation0], 1

// kernel: custom-call
$region0: #{custom-call}
  %s0 = inlined_call_operand.hbm [shape: c64[2,4,16,16], index: 0, kind: input, shape index: {}]
  %s1 = inlined_call_operand.vmem [shape: f32[2,4,16,16], index: 1, kind: output, shape index: {}]
  $region1: #{custom-call} parent=0
    #allocation0 [shape = 's32[1]{0}', space=sflag, size = 0x4, scoped, tag = 'scoped memory for custom-call']
    %2 = vsyncpa [#allocation0], 0
    %s4 = sshll.u32 %s0, 4
    %s5 = int_to_ptr.hbm [resolvable:$true] %s4
    %s6 = sshll.u32 %s1, 4
    %s7 = int_to_ptr.vmem [resolvable:$true] %s6
    %9 = dma.hbm_to_vmem [thread:$0]  %s5, 2048, %s7, [#allocation0]
    %11 = dma.done [#allocation0], 2048
    %12 = vsyncpa [#allocation0], 1

// kernel: custom-call.2
$region0: #{custom-call.2}
  %s0 = inlined_call_operand.vmem [shape: f32[2,4,16,16], index: 0, kind: input, shape index: {}]
  %s1 = inlined_call_operand.vmem [shape: f32[2,4,16,16], index: 1, kind: input, shape index: {}]
  %s2 = inlined_call_operand.hbm [shape: c64[2,4,16,16], index: 2, kind: output, shape index: {}]
  %s3 = scalar_lea.hbm %s2, 128
  $region1: #{custom-call.2} parent=0
    #allocation0 [shape = 's32[1]{0}', space=sflag, size = 0x4, scoped, tag = 'scoped memory for custom-call.2']
    %4 = vsyncpa [#allocation0], 0
    %s6 = sshll.u32 %s0, 4
    %s7 = int_to_ptr.vmem [resolvable:$true] %s6
    %s8 = sshll.u32 %s2, 4
    %s9 = int_to_ptr.hbm [resolvable:$true] %s8
    %11 = dma.vmem_to_hbm [thread:$0]  %s7, 2048, %s9, [#allocation0]
    %13 = dma.done [#allocation0], 2048
    %14 = vsyncpa [#allocation0], 1
  $region2: #{custom-call.2} parent=0
    #allocation1 [shape = 's32[1]{0}', space=sflag, size = 0x4, scoped, tag = 'scoped memory for custom-call.2']
    %15 = vsyncpa [#allocation1], 0
    %s17 = sshll.u32 %s1, 4
    %s18 = int_to_ptr.vmem [resolvable:$true] %s17
    %s19 = sshll.u32 %s3, 4
    %s20 = int_to_ptr.hbm [resolvable:$true] %s19
    %22 = dma.vmem_to_hbm [thread:$0]  %s18, 2048, %s20, [#allocation1]
    %24 = dma.done [#allocation1], 2048
    %25 = vsyncpa [#allocation1], 1

// kernel: mag_min_max_norm.1
$region0: #{mag_min_max_norm.1}
  #allocation0 [shape = 'u32[]', space=smem, size = 0x4, offset = 0x4, fixed_abs, tag = 'smem constant byte address 0x4 - core index']
  #allocation1 [shape = 'u32[72,128]{1,0:T(1,128)}', space=vmem, size = 0x9000, scoped, tag = 'internal scratch']
  %s0 = inlined_call_operand.vmem [shape: f32[16,128], index: 0, kind: input, shape index: {}]
  %s1 = inlined_call_operand.vmem [shape: f32[16,128], index: 1, kind: input, shape index: {}]
  %s2 = inlined_call_operand.vmem [shape: f32[16,128], index: 2, kind: output, shape index: {0}]
  %s3 = inlined_call_operand.vmem [shape: f32[16,128], index: 3, kind: output, shape index: {1}]
  %4 = xla_tuple %s2, %s3
  %s5 = sld [smem:[#allocation0]]
  $region26: #{mag_min_max_norm.1} parent=0
    _
  %s7 = ssub.s32 1, %s5
  %s8 = scalar_select 0, %s7, %s5
  // Predicated region
  $region2: #{mag_min_max_norm.1} parent=0 // pred_check
    _
  $region3: #{mag_min_max_norm.1} parent=0 // pred_check_branch
    %10 = sbr.rel (0) target = $region5
  $region4: #{mag_min_max_norm.1} parent=0 // pred_region
    _
  $region5: #{mag_min_max_norm.1} parent=0 // pred_fallthru
    _
  // Predicated region
  $region6: #{mag_min_max_norm.1} parent=0 // pred_check
    _
  $region7: #{mag_min_max_norm.1} parent=0 // pred_check_branch
    %12 = sbr.rel (0) target = $region9
  $region8: #{mag_min_max_norm.1} parent=0 // pred_region
    _
  $region9: #{mag_min_max_norm.1} parent=0 // pred_fallthru
    _
  %v13 = vld [vmem:[%s0] sm:$0xff]
  %v14 = vld [vmem:[%s0 + $0x8] sm:$0xff]
  %v15 = vld [vmem:[%s1] sm:$0xff]
  %v16 = vld [vmem:[%s1 + $0x8] sm:$0xff]
  %v17 = vmul.f32 %v13, %v13
  %v18 = vmul.f32 %v14, %v14
  %v19 = vmul.f32 %v15, %v15
  %v20 = vmul.f32 %v16, %v16
  %v21 = vadd.f32 %v17, %v19
  %v22 = vadd.f32 %v18, %v20
  %v23 = vmin.f32 %v21, %v22
  %24 = vmin.xlane.f32.xlu0 %v23
  %v25 = vpop.xlane.xlu0 %24
  %v26 = vrot.slane %v25, 4
  %v27 = vmin.f32 %v25, %v26
  %v28 = vrot.slane %v27, 2
  %v29 = vmin.f32 %v27, %v28
  %v30 = vrot.slane %v29, 1
  %v31 = vmin.f32 %v29, %v30
  %s32 = vtos %v31
  %v33 = vstv %s32
  %v34 = vrsqrt.pop %v33
  %v35 = vmul.f32 %v34, %v33
  %v36 = vmul.f32 %v35, %v34
  %v37 = vmul.f32 0.5, %v36
  %v38 = vsub.f32 1.5, %v37
  %v39 = vmul.f32 %v34, %v38
  %v40 = vmul.f32 %v33, %v39
  %vm41 = vcmp.eq.f32.partialorder %v33, inf
  %v42 = vsel %vm41, %v33, %v40
  %vm43 = vcmp.eq.f32.partialorder %v33, 0.0
  %v44 = vand.u32 %v33, 2147483648
  %v45 = vsel %vm43, %v44, %v42
  %s46 = vtos %v45
  %v47 = vmax.f32 %v21, %v22
  %48 = vmax.xlane.f32.xlu0 %v47
  %v49 = vpop.xlane.xlu0 %48
  %v50 = vrot.slane %v49, 4
  %v51 = vmax.f32 %v49, %v50
  %v52 = vrot.slane %v51, 2
  %v53 = vmax.f32 %v51, %v52
  %v54 = vrot.slane %v53, 1
  %v55 = vmax.f32 %v53, %v54
  %s56 = vtos %v55
  %v57 = vstv %s56
  %v58 = vrsqrt.pop %v57
  %v59 = vmul.f32 %v58, %v57
  %v60 = vmul.f32 %v59, %v58
  %v61 = vmul.f32 0.5, %v60
  %v62 = vsub.f32 1.5, %v61
  %v63 = vmul.f32 %v58, %v62
  %v64 = vmul.f32 %v57, %v63
  %vm65 = vcmp.eq.f32.partialorder %v57, inf
  %v66 = vsel %vm65, %v57, %v64
  %vm67 = vcmp.eq.f32.partialorder %v57, 0.0
  %v68 = vand.u32 %v57, 2147483648
  %v69 = vsel %vm67, %v68, %v66
  %s70 = vtos %v69
  %s71 = ssub.f32 %s70, %s46
  %v72 = vstv %s71
  %v73 = vrcp.pop %v72
  %v74 = vmul.f32 %v72, %v73
  %v75 = vsub.f32 1.0, %v74
  %v76 = vmul.f32 %v73, %v75
  %v77 = vadd.f32 %v73, %v76
  %vm78 = vweird.f32 %v72
  %vm79 = vweird.f32 %v73
  %vm80 = vmor %vm78, %vm79
  %v81 = vsel %vm80, %v73, %v77
  %v82 = vand.u32 2147483647, %v72
  %vm83 = vcmp.eq.f32.partialorder %v82, 8.507059e+37
  %v84 = vand.u32 %v72, 2147483648
  %v85 = vor.u32 1.1754944e-38, %v84
  %v86 = vsel %vm83, %v85, %v81
  %s87 = vtos %v86
  %v88 = vstv %s46
  %v89 = vsub.f32 %v13, %v88
  %v90 = vsub.f32 %v14, %v88
  %v91 = vstv %s87
  %v92 = vmul.f32 %v89, %v91
  %v93 = vmul.f32 %v90, %v91
  %94 = vst [vmem:[%s2] sm:$0xff] %v92
  %95 = vst [vmem:[%s2 + $0x8] sm:$0xff] %v93
  %v96 = vmul.f32 %v15, %v91
  %v97 = vmul.f32 %v16, %v91
  %98 = vst [vmem:[%s3] sm:$0xff] %v96
  %99 = vst [vmem:[%s3 + $0x8] sm:$0xff] %v97
  // Predicated region
  $region10: #{mag_min_max_norm.1} parent=0 // pred_check
    _
  $region11: #{mag_min_max_norm.1} parent=0 // pred_check_branch
    %101 = sbr.rel (0) target = $region13
  $region12: #{mag_min_max_norm.1} parent=0 // pred_region
    _
  $region13: #{mag_min_max_norm.1} parent=0 // pred_fallthru
    _
  // Predicated region
  $region14: #{mag_min_max_norm.1} parent=0 // pred_check
    _
  $region15: #{mag_min_max_norm.1} parent=0 // pred_check_branch
    %103 = sbr.rel (0) target = $region17
  $region16: #{mag_min_max_norm.1} parent=0 // pred_region
    _
  $region17: #{mag_min_max_norm.1} parent=0 // pred_fallthru
    _
  // Predicated region
  $region18: #{mag_min_max_norm.1} parent=0 // pred_check
    _
  $region19: #{mag_min_max_norm.1} parent=0 // pred_check_branch
    %105 = sbr.rel (0) target = $region21
  $region20: #{mag_min_max_norm.1} parent=0 // pred_region
    _
  $region21: #{mag_min_max_norm.1} parent=0 // pred_fallthru
    _
  // Predicated region
  $region22: #{mag_min_max_norm.1} parent=0 // pred_check
    _
  $region23: #{mag_min_max_norm.1} parent=0 // pred_check_branch
    %107 = sbr.rel (0) target = $region25
  $region24: #{mag_min_max_norm.1} parent=0 // pred_region
    _
  $region25: #{mag_min_max_norm.1} parent=0 // pred_fallthru
    _

</llo_original>
